<compile_context>
chip_gen: v7x
topology: tpu7x:2x2x1
jax: 0.10.0
libtpu: 0.0.40
codegen_flags: <defaults>
</compile_context>

<pallas_src>
import functools

import numpy as np
import jax
import jax.numpy as jnp
from jax import lax
from jax.experimental import pallas as pl
from jax.experimental.pallas import tpu as pltpu


def _round_up(v, m):
    return (v + m - 1) // m * m


def _layer_geometry(n_batch, in_channels, length, list_layers):
    """Static per-layer geometry (all Python ints, derived from static args)."""
    cfgs = []
    ci, li = in_channels, length
    for (co, k, s, p) in list_layers:
        lp = li + 2 * p                       # padded per-segment length
        lo = (lp - k) // s + 1                # output per-segment length
        cfgs.append(dict(
            ci=ci, co=co, k=k, s=s, p=p,
            cip=_round_up(ci, 8), cop=_round_up(co, 8),
            li=li, lp=lp, lo=lo,
            wide=n_batch * lp,                # width of padded batch-folded input
            wv=n_batch * lp - k + 1,          # width of stride-1 accumulator
        ))
        ci, li = co, lo
    return cfgs


def _selection_matrices(n_batch, cfgs):
    """0/1 matrices that, in a single MXU matmul, (a) subsample the stride-1
    accumulator, (b) drop the junk columns at batch-segment boundaries and
    (c) insert the zero padding of the next layer (or the final dense layout)."""
    sels = []
    for l, c in enumerate(cfgs):
        if l + 1 < len(cfgs):
            nxt = cfgs[l + 1]
            width, seg, off = n_batch * nxt['lp'], nxt['lp'], nxt['p']
        else:
            width, seg, off = n_batch * c['lo'], c['lo'], 0
        sel = np.zeros((c['wv'], width), np.float32)
        for b in range(n_batch):
            for j in range(c['lo']):
                sel[b * c['lp'] + j * c['s'], b * seg + off + j] = 1.0
        sels.append(jnp.asarray(sel))
    return sels


def _make_fused_kernel(n_batch, length, cfgs):
    n_layers = len(cfgs)

    def kernel(x_ref, *refs):
        prm_refs = refs[:3 * n_layers]
        o_ref = refs[3 * n_layers]
        xpad = refs[3 * n_layers + 1]

        # ---- layer 0 input: zero-pad + fold batch into lanes, in VMEM ----
        c0 = cfgs[0]
        xpad[...] = jnp.zeros_like(xpad)
        for b in range(n_batch):
            start = b * c0['lp'] + c0['p']
            xpad[:c0['ci'], start:start + length] = x_ref[b]
        h = xpad[...]                                  # (cip0, N * lp0)

        # ---- chained [conv -> bias -> ReLU -> subsample/re-pad] layers ----
        for l, c in enumerate(cfgs):
            w2d = prm_refs[3 * l][...]                 # (cop, k * cip)
            bias = prm_refs[3 * l + 1][...]            # (cop, 1)
            sel = prm_refs[3 * l + 2][...]             # (wv, next width)
            wv, k = c['wv'], c['k']
            # im2col: K lane-shifted slices stacked along 8-aligned sublane
            # blocks -> the whole K-tap conv is ONE MXU matmul.
            if k > 1:
                op = jnp.concatenate([h[:, j:j + wv] for j in range(k)], axis=0)
            else:
                op = h[:, :wv]
            z = jnp.dot(w2d, op, preferred_element_type=jnp.float32) + bias
            a = jnp.maximum(z, 0.0)                    # fused ReLU
            # stride + segment extraction + next-layer zero padding, one matmul
            h = jnp.dot(a, sel, preferred_element_type=jnp.float32)

        o_ref[...] = h[:cfgs[-1]['co'], :].astype(o_ref.dtype)

    return kernel


@functools.partial(jax.jit, static_argnums=(2,))
def conv1d_stack(x, params, list_layers):
    """Forward pass of the Conv1d module: [conv -> relu] * num_layers,
    fully fused into a single pallas_call."""
    n, cin, length = x.shape
    cfgs = _layer_geometry(n, cin, length, list_layers)
    sels = _selection_matrices(n, cfgs)

    # Glue on the tiny parameters only: pack weights as (Cout_pad8, K*Cin_pad8)
    # so in-kernel sublane concatenation is 8-aligned; biases as (Cout_pad8, 1).
    flat_inputs = [x]
    for (w, b), c, sel in zip(params, cfgs, sels):
        w_t = jnp.transpose(w, (0, 2, 1))                          # (co, k, ci)
        w_t = jnp.pad(w_t, ((0, c['cop'] - c['co']), (0, 0),
                            (0, c['cip'] - c['ci'])))
        w2d = w_t.reshape(c['cop'], c['k'] * c['cip'])
        b2d = jnp.pad(b, (0, c['cop'] - c['co'])).reshape(c['cop'], 1)
        flat_inputs.extend([w2d, b2d, sel])

    last = cfgs[-1]
    out_w = n * last['lo']

    def full_spec(shape):
        nd = len(shape)
        return pl.BlockSpec(shape, lambda i, _nd=nd: (0,) * _nd)

    kernel = _make_fused_kernel(n, length, cfgs)
    out2d = pl.pallas_call(
        kernel,
        out_shape=jax.ShapeDtypeStruct((last['co'], out_w), x.dtype),
        grid=(1,),
        in_specs=[full_spec(a.shape) for a in flat_inputs],
        out_specs=full_spec((last['co'], out_w)),
        scratch_shapes=[pltpu.VMEM((cfgs[0]['cip'], cfgs[0]['wide']),
                                   jnp.float32)],
        compiler_params=pltpu.CompilerParams(
            dimension_semantics=("arbitrary",)),
    )(*flat_inputs)

    # Layout plumbing only: (Cout, N*L_out) -> (N, Cout, L_out)
    return out2d.reshape(last['co'], n, last['lo']).transpose(1, 0, 2)


def init_params(key, in_channels, list_layers, dtype=jnp.float32):
    """Deterministic parameter init mirroring the LazyConv1d shapes."""
    params = []
    cin = in_channels
    for (cout, ksize, _stride, _pad) in list_layers:
        key, kw, kb = jax.random.split(key, 3)
        bound = float(1.0 / np.sqrt(cin * ksize))
        w = jax.random.uniform(kw, (cout, cin, ksize), dtype, -bound, bound)
        b = jax.random.uniform(kb, (cout,), dtype, -bound, bound)
        params.append((w, b))
        cin = cout
    return params


def _reference(x, params, list_layers):
    """Pure-JAX reference (lax conv) for a correctness sanity check."""
    for (w, b), (_cout, _k, stride, padding) in zip(params, list_layers):
        y = lax.conv_general_dilated(
            x, w, window_strides=(stride,), padding=[(padding, padding)],
            dimension_numbers=("NCH", "OIH", "NCH"))
        x = jnp.maximum(y + b[None, :, None], 0.0)
    return x


if __name__ == "__main__":
    # list_layers entries: (out_channels, kernel_size, stride, padding)
    list_layers = ((8, 3, 1, 1), (16, 5, 2, 2), (8, 3, 1, 0))
    in_channels = 4
    batch, length = 2, 16

    key = jax.random.PRNGKey(0)
    key, kx = jax.random.split(key)
    x = jax.random.normal(kx, (batch, in_channels, length), jnp.float32)
    params = init_params(key, in_channels, list_layers)

    out = conv1d_stack(x, params, list_layers)
    out = jax.block_until_ready(out)

    ref = _reference(x, params, list_layers)
    assert out.shape == ref.shape, (out.shape, ref.shape)
    assert jnp.allclose(out, ref, atol=1e-3, rtol=1e-3)

    print("KERNEL_OK")
</pallas_src>

<mosaic_0001>
module attributes {stable_mosaic.version = 11 : i64} {
  func.func @kernel(%arg0: i32, %arg1: memref<2x4x16xf32, #tpu.memory_space<vmem>>, %arg2: memref<8x24xf32, #tpu.memory_space<vmem>>, %arg3: memref<8x1xf32, #tpu.memory_space<vmem>>, %arg4: memref<34x40xf32, #tpu.memory_space<vmem>>, %arg5: memref<16x40xf32, #tpu.memory_space<vmem>>, %arg6: memref<16x1xf32, #tpu.memory_space<vmem>>, %arg7: memref<36x16xf32, #tpu.memory_space<vmem>>, %arg8: memref<8x48xf32, #tpu.memory_space<vmem>>, %arg9: memref<8x1xf32, #tpu.memory_space<vmem>>, %arg10: memref<14x12xf32, #tpu.memory_space<vmem>>, %arg11: memref<8x12xf32, #tpu.memory_space<vmem>>, %arg12: memref<8x36xf32, #tpu.memory_space<vmem>>) attributes {dimension_semantics = [#tpu.dimension_semantics<arbitrary>], iteration_bounds = array<i64: 1>, scalar_prefetch = 0 : i64, scratch_operands = 1 : i64, tpu.core_type = #tpu.core_type<tc>, window_params = [{pipeline_mode = #tpu.pipeline_mode<synchronous>, transform_indices = @transform_0, window_bounds = array<i64: 2, 4, 16>}, {pipeline_mode = #tpu.pipeline_mode<synchronous>, transform_indices = @transform_1, window_bounds = array<i64: 8, 24>}, {pipeline_mode = #tpu.pipeline_mode<synchronous>, transform_indices = @transform_2, window_bounds = array<i64: 8, 1>}, {pipeline_mode = #tpu.pipeline_mode<synchronous>, transform_indices = @transform_3, window_bounds = array<i64: 34, 40>}, {pipeline_mode = #tpu.pipeline_mode<synchronous>, transform_indices = @transform_4, window_bounds = array<i64: 16, 40>}, {pipeline_mode = #tpu.pipeline_mode<synchronous>, transform_indices = @transform_5, window_bounds = array<i64: 16, 1>}, {pipeline_mode = #tpu.pipeline_mode<synchronous>, transform_indices = @transform_6, window_bounds = array<i64: 36, 16>}, {pipeline_mode = #tpu.pipeline_mode<synchronous>, transform_indices = @transform_7, window_bounds = array<i64: 8, 48>}, {pipeline_mode = #tpu.pipeline_mode<synchronous>, transform_indices = @transform_8, window_bounds = array<i64: 8, 1>}, {pipeline_mode = #tpu.pipeline_mode<synchronous>, transform_indices = @transform_9, window_bounds = array<i64: 14, 12>}, {pipeline_mode = #tpu.pipeline_mode<synchronous>, transform_indices = @transform_10, window_bounds = array<i64: 8, 12>}]} {
    %cst = arith.constant 0.000000e+00 : f32
    %0 = vector.broadcast %cst : f32 to vector<8x36xf32>
    %c0 = arith.constant 0 : index
    %c0_0 = arith.constant 0 : index
    %1 = vector.load %arg12[%c0, %c0_0] : memref<8x36xf32, #tpu.memory_space<vmem>>, vector<8x36xf32>
    tpu.vector_store %arg12[%c0, %c0_0], %0 {strides = array<i32>} : memref<8x36xf32, #tpu.memory_space<vmem>>, vector<8x36xf32>,
    %c0_1 = arith.constant 0 : index
    %c0_2 = arith.constant 0 : index
    %c0_3 = arith.constant 0 : index
    %2 = vector.load %arg1[%c0_1, %c0_2, %c0_3] : memref<2x4x16xf32, #tpu.memory_space<vmem>>, vector<1x4x16xf32>
    %3 = vector.shape_cast %2 : vector<1x4x16xf32> to vector<4x16xf32>
    %c0_4 = arith.constant 0 : index
    %c1 = arith.constant 1 : index
    %4 = vector.load %arg12[%c0_4, %c1] : memref<8x36xf32, #tpu.memory_space<vmem>>, vector<4x16xf32>
    tpu.vector_store %arg12[%c0_4, %c1], %3 {strides = array<i32>} : memref<8x36xf32, #tpu.memory_space<vmem>>, vector<4x16xf32>,
    %c1_5 = arith.constant 1 : index
    %c0_6 = arith.constant 0 : index
    %c0_7 = arith.constant 0 : index
    %5 = vector.load %arg1[%c1_5, %c0_6, %c0_7] : memref<2x4x16xf32, #tpu.memory_space<vmem>>, vector<1x4x16xf32>
    %6 = vector.shape_cast %5 : vector<1x4x16xf32> to vector<4x16xf32>
    %c0_8 = arith.constant 0 : index
    %c19 = arith.constant 19 : index
    %7 = vector.load %arg12[%c0_8, %c19] : memref<8x36xf32, #tpu.memory_space<vmem>>, vector<4x16xf32>
    tpu.vector_store %arg12[%c0_8, %c19], %6 {strides = array<i32>} : memref<8x36xf32, #tpu.memory_space<vmem>>, vector<4x16xf32>,
    %c0_9 = arith.constant 0 : index
    %c0_10 = arith.constant 0 : index
    %8 = vector.load %arg12[%c0_9, %c0_10] : memref<8x36xf32, #tpu.memory_space<vmem>>, vector<8x36xf32>
    %c0_11 = arith.constant 0 : index
    %c0_12 = arith.constant 0 : index
    %9 = vector.load %arg2[%c0_11, %c0_12] : memref<8x24xf32, #tpu.memory_space<vmem>>, vector<8x24xf32>
    %c0_13 = arith.constant 0 : index
    %c0_14 = arith.constant 0 : index
    %10 = vector.load %arg3[%c0_13, %c0_14] : memref<8x1xf32, #tpu.memory_space<vmem>>, vector<8x1xf32>
    %c0_15 = arith.constant 0 : index
    %c0_16 = arith.constant 0 : index
    %11 = vector.load %arg4[%c0_15, %c0_16] : memref<34x40xf32, #tpu.memory_space<vmem>>, vector<34x40xf32>
    %12 = vector.extract_strided_slice %8 {offsets = [0, 0], sizes = [8, 34], strides = [1, 1]} : vector<8x36xf32> to vector<8x34xf32>
    %13 = vector.extract_strided_slice %8 {offsets = [0, 1], sizes = [8, 34], strides = [1, 1]} : vector<8x36xf32> to vector<8x34xf32>
    %14 = vector.extract_strided_slice %8 {offsets = [0, 2], sizes = [8, 34], strides = [1, 1]} : vector<8x36xf32> to vector<8x34xf32>
    %15 = tpu.concatenate %12, %13, %14 in 0 : vector<8x34xf32>, vector<8x34xf32>, vector<8x34xf32> -> vector<24x34xf32>
    %cst_17 = arith.constant dense<0.000000e+00> : vector<8x34xf32>
    %16 = tpu.matmul %9, %15, %cst_17 {dimension_numbers = #tpu.dot_dimension_numbers<[1], [0], [0], [1], [0, 0, 1, 1], [], []>} : vector<8x24xf32>, vector<24x34xf32>, vector<8x34xf32> -> vector<8x34xf32>
    %17 = vector.broadcast %10 : vector<8x1xf32> to vector<8x34xf32>
    %18 = arith.addf %16, %17 : vector<8x34xf32>
    %cst_18 = arith.constant 0.000000e+00 : f32
    %19 = vector.broadcast %cst_18 : f32 to vector<8x34xf32>
    %20 = arith.maximumf %18, %19 : vector<8x34xf32>
    %cst_19 = arith.constant dense<0.000000e+00> : vector<8x40xf32>
    %21 = tpu.matmul %20, %11, %cst_19 {dimension_numbers = #tpu.dot_dimension_numbers<[1], [0], [0], [1], [0, 0, 1, 1], [], []>} : vector<8x34xf32>, vector<34x40xf32>, vector<8x40xf32> -> vector<8x40xf32>
    %c0_20 = arith.constant 0 : index
    %c0_21 = arith.constant 0 : index
    %22 = vector.load %arg5[%c0_20, %c0_21] : memref<16x40xf32, #tpu.memory_space<vmem>>, vector<16x40xf32>
    %c0_22 = arith.constant 0 : index
    %c0_23 = arith.constant 0 : index
    %23 = vector.load %arg6[%c0_22, %c0_23] : memref<16x1xf32, #tpu.memory_space<vmem>>, vector<16x1xf32>
    %c0_24 = arith.constant 0 : index
    %c0_25 = arith.constant 0 : index
    %24 = vector.load %arg7[%c0_24, %c0_25] : memref<36x16xf32, #tpu.memory_space<vmem>>, vector<36x16xf32>
    %25 = vector.extract_strided_slice %21 {offsets = [0, 0], sizes = [8, 36], strides = [1, 1]} : vector<8x40xf32> to vector<8x36xf32>
    %26 = vector.extract_strided_slice %21 {offsets = [0, 1], sizes = [8, 36], strides = [1, 1]} : vector<8x40xf32> to vector<8x36xf32>
    %27 = vector.extract_strided_slice %21 {offsets = [0, 2], sizes = [8, 36], strides = [1, 1]} : vector<8x40xf32> to vector<8x36xf32>
    %28 = vector.extract_strided_slice %21 {offsets = [0, 3], sizes = [8, 36], strides = [1, 1]} : vector<8x40xf32> to vector<8x36xf32>
    %29 = vector.extract_strided_slice %21 {offsets = [0, 4], sizes = [8, 36], strides = [1, 1]} : vector<8x40xf32> to vector<8x36xf32>
    %30 = tpu.concatenate %25, %26, %27, %28, %29 in 0 : vector<8x36xf32>, vector<8x36xf32>, vector<8x36xf32>, vector<8x36xf32>, vector<8x36xf32> -> vector<40x36xf32>
    %cst_26 = arith.constant dense<0.000000e+00> : vector<16x36xf32>
    %31 = tpu.matmul %22, %30, %cst_26 {dimension_numbers = #tpu.dot_dimension_numbers<[1], [0], [0], [1], [0, 0, 1, 1], [], []>} : vector<16x40xf32>, vector<40x36xf32>, vector<16x36xf32> -> vector<16x36xf32>
    %32 = vector.broadcast %23 : vector<16x1xf32> to vector<16x36xf32>
    %33 = arith.addf %31, %32 : vector<16x36xf32>
    %cst_27 = arith.constant 0.000000e+00 : f32
    %34 = vector.broadcast %cst_27 : f32 to vector<16x36xf32>
    %35 = arith.maximumf %33, %34 : vector<16x36xf32>
    %cst_28 = arith.constant dense<0.000000e+00> : vector<16x16xf32>
    %36 = tpu.matmul %35, %24, %cst_28 {dimension_numbers = #tpu.dot_dimension_numbers<[1], [0], [0], [1], [0, 0, 1, 1], [], []>} : vector<16x36xf32>, vector<36x16xf32>, vector<16x16xf32> -> vector<16x16xf32>
    %c0_29 = arith.constant 0 : index
    %c0_30 = arith.constant 0 : index
    %37 = vector.load %arg8[%c0_29, %c0_30] : memref<8x48xf32, #tpu.memory_space<vmem>>, vector<8x48xf32>
    %c0_31 = arith.constant 0 : index
    %c0_32 = arith.constant 0 : index
    %38 = vector.load %arg9[%c0_31, %c0_32] : memref<8x1xf32, #tpu.memory_space<vmem>>, vector<8x1xf32>
    %c0_33 = arith.constant 0 : index
    %c0_34 = arith.constant 0 : index
    %39 = vector.load %arg10[%c0_33, %c0_34] : memref<14x12xf32, #tpu.memory_space<vmem>>, vector<14x12xf32>
    %40 = vector.extract_strided_slice %36 {offsets = [0, 0], sizes = [16, 14], strides = [1, 1]} : vector<16x16xf32> to vector<16x14xf32>
    %41 = vector.extract_strided_slice %36 {offsets = [0, 1], sizes = [16, 14], strides = [1, 1]} : vector<16x16xf32> to vector<16x14xf32>
    %42 = vector.extract_strided_slice %36 {offsets = [0, 2], sizes = [16, 14], strides = [1, 1]} : vector<16x16xf32> to vector<16x14xf32>
    %43 = tpu.concatenate %40, %41, %42 in 0 : vector<16x14xf32>, vector<16x14xf32>, vector<16x14xf32> -> vector<48x14xf32>
    %cst_35 = arith.constant dense<0.000000e+00> : vector<8x14xf32>
    %44 = tpu.matmul %37, %43, %cst_35 {dimension_numbers = #tpu.dot_dimension_numbers<[1], [0], [0], [1], [0, 0, 1, 1], [], []>} : vector<8x48xf32>, vector<48x14xf32>, vector<8x14xf32> -> vector<8x14xf32>
    %45 = vector.broadcast %38 : vector<8x1xf32> to vector<8x14xf32>
    %46 = arith.addf %44, %45 : vector<8x14xf32>
    %cst_36 = arith.constant 0.000000e+00 : f32
    %47 = vector.broadcast %cst_36 : f32 to vector<8x14xf32>
    %48 = arith.maximumf %46, %47 : vector<8x14xf32>
    %cst_37 = arith.constant dense<0.000000e+00> : vector<8x12xf32>
    %49 = tpu.matmul %48, %39, %cst_37 {dimension_numbers = #tpu.dot_dimension_numbers<[1], [0], [0], [1], [0, 0, 1, 1], [], []>} : vector<8x14xf32>, vector<14x12xf32>, vector<8x12xf32> -> vector<8x12xf32>
    %c0_38 = arith.constant 0 : index
    %c0_39 = arith.constant 0 : index
    %50 = vector.load %arg11[%c0_38, %c0_39] : memref<8x12xf32, #tpu.memory_space<vmem>>, vector<8x12xf32>
    tpu.vector_store %arg11[%c0_38, %c0_39], %49 {strides = array<i32>} : memref<8x12xf32, #tpu.memory_space<vmem>>, vector<8x12xf32>,
    return
  }
  func.func @transform_0(%arg0: i32) -> (i32, i32, i32) {
    %c0_i32 = arith.constant 0 : i32
    %c0_i32_0 = arith.constant 0 : i32
    %c0_i32_1 = arith.constant 0 : i32
    %c0_i32_2 = arith.constant 0 : i32
    return %c0_i32, %c0_i32_0, %c0_i32_1 : i32, i32, i32
  }
  func.func @transform_1(%arg0: i32) -> (i32, i32) {
    %c0_i32 = arith.constant 0 : i32
    %c0_i32_0 = arith.constant 0 : i32
    %c0_i32_1 = arith.constant 0 : i32
    return %c0_i32, %c0_i32_0 : i32, i32
  }
  func.func @transform_2(%arg0: i32) -> (i32, i32) {
    %c0_i32 = arith.constant 0 : i32
    %c0_i32_0 = arith.constant 0 : i32
    %c0_i32_1 = arith.constant 0 : i32
    return %c0_i32, %c0_i32_0 : i32, i32
  }
  func.func @transform_3(%arg0: i32) -> (i32, i32) {
    %c0_i32 = arith.constant 0 : i32
    %c0_i32_0 = arith.constant 0 : i32
    %c0_i32_1 = arith.constant 0 : i32
    return %c0_i32, %c0_i32_0 : i32, i32
  }
  func.func @transform_4(%arg0: i32) -> (i32, i32) {
    %c0_i32 = arith.constant 0 : i32
    %c0_i32_0 = arith.constant 0 : i32
    %c0_i32_1 = arith.constant 0 : i32
    return %c0_i32, %c0_i32_0 : i32, i32
  }
  func.func @transform_5(%arg0: i32) -> (i32, i32) {
    %c0_i32 = arith.constant 0 : i32
    %c0_i32_0 = arith.constant 0 : i32
    %c0_i32_1 = arith.constant 0 : i32
    return %c0_i32, %c0_i32_0 : i32, i32
  }
  func.func @transform_6(%arg0: i32) -> (i32, i32) {
    %c0_i32 = arith.constant 0 : i32
    %c0_i32_0 = arith.constant 0 : i32
    %c0_i32_1 = arith.constant 0 : i32
    return %c0_i32, %c0_i32_0 : i32, i32
  }
  func.func @transform_7(%arg0: i32) -> (i32, i32) {
    %c0_i32 = arith.constant 0 : i32
    %c0_i32_0 = arith.constant 0 : i32
    %c0_i32_1 = arith.constant 0 : i32
    return %c0_i32, %c0_i32_0 : i32, i32
  }
  func.func @transform_8(%arg0: i32) -> (i32, i32) {
    %c0_i32 = arith.constant 0 : i32
    %c0_i32_0 = arith.constant 0 : i32
    %c0_i32_1 = arith.constant 0 : i32
    return %c0_i32, %c0_i32_0 : i32, i32
  }
  func.func @transform_9(%arg0: i32) -> (i32, i32) {
    %c0_i32 = arith.constant 0 : i32
    %c0_i32_0 = arith.constant 0 : i32
    %c0_i32_1 = arith.constant 0 : i32
    return %c0_i32, %c0_i32_0 : i32, i32
  }
  func.func @transform_10(%arg0: i32) -> (i32, i32) {
    %c0_i32 = arith.constant 0 : i32
    %c0_i32_0 = arith.constant 0 : i32
    %c0_i32_1 = arith.constant 0 : i32
    return %c0_i32, %c0_i32_0 : i32, i32
  }
}

</mosaic_0001>

<llo_original>
// kernel: conv1d_stack.1
$region0: #{conv1d_stack.1}
  #allocation0 [shape = 'u32[]', space=smem, size = 0x4, offset = 0x4, fixed_abs, tag = 'smem constant byte address 0x4 - core index']
  #allocation1 [shape = 'u32[144,128]{1,0:T(1,128)}', space=vmem, size = 0x12000, scoped, tag = 'internal scratch']
  #allocation2 [shape = 'f32[8,36]{1,0:T(8,128)}', space=vmem, size = 0x1000, scoped, tag = 'scratch operand']
  %s0 = inlined_call_operand.vmem [shape: f32[2,4,16], index: 0, kind: input, shape index: {}]
  %s1 = inlined_call_operand.vmem [shape: f32[8,24], index: 1, kind: input, shape index: {}]
  %s2 = inlined_call_operand.vmem [shape: f32[8,1], index: 2, kind: input, shape index: {}]
  %s3 = inlined_call_operand.vmem [shape: f32[34,40], index: 3, kind: input, shape index: {}]
  %s4 = inlined_call_operand.vmem [shape: f32[16,40], index: 4, kind: input, shape index: {}]
  %s5 = inlined_call_operand.vmem [shape: f32[16,1], index: 5, kind: input, shape index: {}]
  %s6 = inlined_call_operand.vmem [shape: f32[36,16], index: 6, kind: input, shape index: {}]
  %s7 = inlined_call_operand.vmem [shape: f32[8,48], index: 7, kind: input, shape index: {}]
  %s8 = inlined_call_operand.vmem [shape: f32[8,1], index: 8, kind: input, shape index: {}]
  %s9 = inlined_call_operand.vmem [shape: f32[14,12], index: 9, kind: input, shape index: {}]
  %s10 = inlined_call_operand.vmem [shape: f32[8,12], index: 10, kind: output, shape index: {}]
  %s11 = sld [smem:[#allocation0]]
  $region50: #{conv1d_stack.1} parent=0
    _
  %s13 = ssub.s32 1, %s11
  %s14 = scalar_select 0, %s13, %s11
  // Predicated region
  $region2: #{conv1d_stack.1} parent=0 // pred_check
    _
  $region3: #{conv1d_stack.1} parent=0 // pred_check_branch
    %16 = sbr.rel (0) target = $region5
  $region4: #{conv1d_stack.1} parent=0 // pred_region
    _
  $region5: #{conv1d_stack.1} parent=0 // pred_fallthru
    _
  // Predicated region
  $region6: #{conv1d_stack.1} parent=0 // pred_check
    _
  $region7: #{conv1d_stack.1} parent=0 // pred_check_branch
    %18 = sbr.rel (0) target = $region9
  $region8: #{conv1d_stack.1} parent=0 // pred_region
    _
  $region9: #{conv1d_stack.1} parent=0 // pred_fallthru
    _
  // Predicated region
  $region10: #{conv1d_stack.1} parent=0 // pred_check
    _
  $region11: #{conv1d_stack.1} parent=0 // pred_check_branch
    %20 = sbr.rel (0) target = $region13
  $region12: #{conv1d_stack.1} parent=0 // pred_region
    _
  $region13: #{conv1d_stack.1} parent=0 // pred_fallthru
    _
  // Predicated region
  $region14: #{conv1d_stack.1} parent=0 // pred_check
    _
  $region15: #{conv1d_stack.1} parent=0 // pred_check_branch
    %22 = sbr.rel (0) target = $region17
  $region16: #{conv1d_stack.1} parent=0 // pred_region
    _
  $region17: #{conv1d_stack.1} parent=0 // pred_fallthru
    _
  // Predicated region
  $region18: #{conv1d_stack.1} parent=0 // pred_check
    _
  $region19: #{conv1d_stack.1} parent=0 // pred_check_branch
    %24 = sbr.rel (0) target = $region21
  $region20: #{conv1d_stack.1} parent=0 // pred_region
    _
  $region21: #{conv1d_stack.1} parent=0 // pred_fallthru
    _
  // Predicated region
  $region22: #{conv1d_stack.1} parent=0 // pred_check
    _
  $region23: #{conv1d_stack.1} parent=0 // pred_check_branch
    %26 = sbr.rel (0) target = $region25
  $region24: #{conv1d_stack.1} parent=0 // pred_region
    _
  $region25: #{conv1d_stack.1} parent=0 // pred_fallthru
    _
  // Predicated region
  $region26: #{conv1d_stack.1} parent=0 // pred_check
    _
  $region27: #{conv1d_stack.1} parent=0 // pred_check_branch
    %28 = sbr.rel (0) target = $region29
  $region28: #{conv1d_stack.1} parent=0 // pred_region
    _
  $region29: #{conv1d_stack.1} parent=0 // pred_fallthru
    _
  // Predicated region
  $region30: #{conv1d_stack.1} parent=0 // pred_check
    _
  $region31: #{conv1d_stack.1} parent=0 // pred_check_branch
    %30 = sbr.rel (0) target = $region33
  $region32: #{conv1d_stack.1} parent=0 // pred_region
    _
  $region33: #{conv1d_stack.1} parent=0 // pred_fallthru
    _
  // Predicated region
  $region34: #{conv1d_stack.1} parent=0 // pred_check
    _
  $region35: #{conv1d_stack.1} parent=0 // pred_check_branch
    %32 = sbr.rel (0) target = $region37
  $region36: #{conv1d_stack.1} parent=0 // pred_region
    _
  $region37: #{conv1d_stack.1} parent=0 // pred_fallthru
    _
  // Predicated region
  $region38: #{conv1d_stack.1} parent=0 // pred_check
    _
  $region39: #{conv1d_stack.1} parent=0 // pred_check_branch
    %34 = sbr.rel (0) target = $region41
  $region40: #{conv1d_stack.1} parent=0 // pred_region
    _
  $region41: #{conv1d_stack.1} parent=0 // pred_fallthru
    _
  %vm35 = vcmask 293888
  %36 = vst.msk [vmem:[#allocation2] sm:$0xff] %vm35, 0.0
  %v37 = vld [vmem:[%s0] sm:$0xf]
  %39 = vrot.lane.b32.xlu0 %v37, 1
  %v40 = vpop.permute.xlu0 %39
  %vm42 = vcmask 134152
  %43 = vst.msk [vmem:[#allocation2] sm:$0xf] %vm42, %v40
  %s44 = scalar_lea.vmem %s0, 4
  %v45 = vld [vmem:[%s44] sm:$0xf]
  %47 = vrot.lane.b32.xlu0 %v45, 19
  %v48 = vpop.permute.xlu0 %47
  %vm50 = vcmask 281752
  %51 = vst.msk [vmem:[#allocation2] sm:$0xf] %vm50, %v48
  %v52 = vld [vmem:[#allocation2] sm:$0xff]
  %v53 = vld [vmem:[%s1] sm:$0xff]
  %v54 = vld [vmem:[%s2] sm:$0xff]
  %v55 = vld [vmem:[%s3] sm:$0xff]
  %v56 = vld [vmem:[%s3 + $0x8] sm:$0xff]
  %v57 = vld [vmem:[%s3 + $0x10] sm:$0xff]
  %v58 = vld [vmem:[%s3 + $0x18] sm:$0xff]
  %v59 = vld [vmem:[%s3 + $0x20] sm:$0x3]
  %61 = vrot.lane.b32.xlu0 %v52, 127
  %v62 = vpop.permute.xlu0 %61
  %64 = vrot.lane.b32.xlu0 %v52, 126
  %v65 = vpop.permute.xlu0 %64
  %68 = vset.pattern.permute.xlu0 0
  %69 = vperm.xlu0 %68, %v54
  %v70 = vpop.permute.xlu0 %69
  %vm72 = vcmask 195584
  %v74 = vsel %vm72, %v53, 0
  %76 = vmatprep.subr.mxu0 0.0
  %77 = vmatpush1.msra.mxu0 %v52
  %78 = vmatprep.subr.mxu0 0.0
  %79 = vmatpush1.msra.mxu0 %v62
  %80 = vmatprep.subr.mxu0 0.0
  %81 = vmatpush1.msra.mxu0 %v65
  %82 = vmatprep.subr.mxu0 0.0
  %83 = vmatpush1.msra.mxu0 0.0
  %84 = vmatprep.subr.mxu0 0.0
  %85 = vmatpush1.msra.mxu0 0.0
  %86 = vmatprep.subr.mxu0 0.0
  %87 = vmatpush1.msra.mxu0 0.0
  %88 = vmatprep.subr.mxu0 0.0
  %89 = vmatpush1.msra.mxu0 0.0
  %90 = vmatprep.subr.mxu0 0.0
  %91 = vmatpush1.msra.mxu0 0.0
  %92 = vmatprep.subr.mxu0 0.0
  %93 = vmatpush1.msra.mxu0 0.0
  %94 = vmatprep.subr.mxu0 0.0
  %95 = vmatpush1.msra.mxu0 0.0
  %96 = vmatprep.subr.mxu0 0.0
  %97 = vmatpush1.msra.mxu0 0.0
  %98 = vmatprep.subr.mxu0 0.0
  %99 = vmatpush1.msra.mxu0 0.0
  %100 = vmatprep.subr.mxu0 0.0
  %101 = vmatpush1.msra.mxu0 0.0
  %102 = vmatprep.subr.mxu0 0.0
  %103 = vmatpush1.msra.mxu0 0.0
  %104 = vmatprep.subr.mxu0 0.0
  %105 = vmatpush1.msra.mxu0 0.0
  %106 = vmatprep.subr.mxu0 0.0
  %107 = vmatpush1.msra.mxu0 0.0
  %108 = vmatprep.subr.mxu0 0.0
  %109 = vmatpush1.msra.mxu0 0.0
  %110 = vmatprep.subr.mxu0 0.0
  %111 = vmatpush1.msra.mxu0 0.0
  %112 = vmatprep.subr.mxu0 0.0
  %113 = vmatpush1.msra.mxu0 0.0
  %114 = vmatprep.subr.mxu0 0.0
  %115 = vmatpush1.msra.mxu0 0.0
  %116 = vmatprep.subr.mxu0 0.0
  %117 = vmatpush1.msra.mxu0 0.0
  %118 = vmatprep.subr.mxu0 0.0
  %119 = vmatpush1.msra.mxu0 0.0
  %120 = vmatprep.subr.mxu0 0.0
  %121 = vmatpush1.msra.mxu0 0.0
  %122 = vmatprep.subr.mxu0 0.0
  %123 = vmatpush1.msra.mxu0 0.0
  %124 = vmatprep.subr.mxu0 0.0
  %125 = vmatpush1.msra.mxu0 0.0
  %126 = vmatprep.subr.mxu0 0.0
  %127 = vmatpush1.msra.mxu0 0.0
  %128 = vmatprep.subr.mxu0 0.0
  %129 = vmatpush1.msra.mxu0 0.0
  %130 = vmatprep.subr.mxu0 0.0
  %131 = vmatpush1.msra.mxu0 0.0
  %132 = vmatprep.subr.mxu0 0.0
  %133 = vmatpush1.msra.mxu0 0.0
  %134 = vmatprep.subr.mxu0 0.0
  %135 = vmatpush1.msra.mxu0 0.0
  %136 = vmatprep.subr.mxu0 0.0
  %137 = vmatpush1.msra.mxu0 0.0
  %138 = vmatprep.subr.mxu0 0.0
  %139 = vmatpush1.msra.mxu0 0.0
  %140 = vmatprep.mubr.f32.mxu0 0.0
  %141 = vmatmul.mubr.f32.gmra.mrb[0].mxu0 %v74
  %v142 = vpop.f32.mrb[0].mxu0
  %v143 = vadd.f32 %v70, %v142
  %v144 = vpop.f32.mrb[0].mxu0
  %145 = vdwg.mxu0
  %v146 = vmax.f32 %v143, 0.0
  %vm147 = vcmask 277504
  %v149 = vsel %vm147, %v146, 0
  %vm151 = vcmask 1041408
  %v153 = vsel %vm151, %v59, 0
  %155 = vmatprep.subr.mxu0 0.0
  %156 = vmatpush1.msra.mxu0 %v55
  %157 = vmatprep.subr.mxu0 0.0
  %158 = vmatpush1.msra.mxu0 %v56
  %159 = vmatprep.subr.mxu0 0.0
  %160 = vmatpush1.msra.mxu0 %v57
  %161 = vmatprep.subr.mxu0 0.0
  %162 = vmatpush1.msra.mxu0 %v58
  %163 = vmatprep.subr.mxu0 0.0
  %164 = vmatpush1.msra.mxu0 %v153
  %165 = vmatprep.subr.mxu0 0.0
  %166 = vmatpush1.msra.mxu0 0.0
  %167 = vmatprep.subr.mxu0 0.0
  %168 = vmatpush1.msra.mxu0 0.0
  %169 = vmatprep.subr.mxu0 0.0
  %170 = vmatpush1.msra.mxu0 0.0
  %171 = vmatprep.subr.mxu0 0.0
  %172 = vmatpush1.msra.mxu0 0.0
  %173 = vmatprep.subr.mxu0 0.0
  %174 = vmatpush1.msra.mxu0 0.0
  %175 = vmatprep.subr.mxu0 0.0
  %176 = vmatpush1.msra.mxu0 0.0
  %177 = vmatprep.subr.mxu0 0.0
  %178 = vmatpush1.msra.mxu0 0.0
  %179 = vmatprep.subr.mxu0 0.0
  %180 = vmatpush1.msra.mxu0 0.0
  %181 = vmatprep.subr.mxu0 0.0
  %182 = vmatpush1.msra.mxu0 0.0
  %183 = vmatprep.subr.mxu0 0.0
  %184 = vmatpush1.msra.mxu0 0.0
  %185 = vmatprep.subr.mxu0 0.0
  %186 = vmatpush1.msra.mxu0 0.0
  %187 = vmatprep.subr.mxu0 0.0
  %188 = vmatpush1.msra.mxu0 0.0
  %189 = vmatprep.subr.mxu0 0.0
  %190 = vmatpush1.msra.mxu0 0.0
  %191 = vmatprep.subr.mxu0 0.0
  %192 = vmatpush1.msra.mxu0 0.0
  %193 = vmatprep.subr.mxu0 0.0
  %194 = vmatpush1.msra.mxu0 0.0
  %195 = vmatprep.subr.mxu0 0.0
  %196 = vmatpush1.msra.mxu0 0.0
  %197 = vmatprep.subr.mxu0 0.0
  %198 = vmatpush1.msra.mxu0 0.0
  %199 = vmatprep.subr.mxu0 0.0
  %200 = vmatpush1.msra.mxu0 0.0
  %201 = vmatprep.subr.mxu0 0.0
  %202 = vmatpush1.msra.mxu0 0.0
  %203 = vmatprep.subr.mxu0 0.0
  %204 = vmatpush1.msra.mxu0 0.0
  %205 = vmatprep.subr.mxu0 0.0
  %206 = vmatpush1.msra.mxu0 0.0
  %207 = vmatprep.subr.mxu0 0.0
  %208 = vmatpush1.msra.mxu0 0.0
  %209 = vmatprep.subr.mxu0 0.0
  %210 = vmatpush1.msra.mxu0 0.0
  %211 = vmatprep.subr.mxu0 0.0
  %212 = vmatpush1.msra.mxu0 0.0
  %213 = vmatprep.subr.mxu0 0.0
  %214 = vmatpush1.msra.mxu0 0.0
  %215 = vmatprep.subr.mxu0 0.0
  %216 = vmatpush1.msra.mxu0 0.0
  %217 = vmatprep.subr.mxu0 0.0
  %218 = vmatpush1.msra.mxu0 0.0
  %219 = vmatprep.mubr.f32.mxu0 0.0
  %220 = vmatmul.mubr.f32.gmra.mrb[0].mxu0 %v149
  %v221 = vpop.f32.mrb[0].mxu0
  %v222 = vadd.f32 0.0, %v221
  %v223 = vpop.f32.mrb[0].mxu0
  %224 = vdwg.mxu0
  %v225 = vld [vmem:[%s4] sm:$0xff]
  %v226 = vld [vmem:[%s4 + $0x8] sm:$0xff]
  %v227 = vld [vmem:[%s5] sm:$0xff]
  %v228 = vld [vmem:[%s5 + $0x8] sm:$0xff]
  %v229 = vld [vmem:[%s6] sm:$0xff]
  %v230 = vld [vmem:[%s6 + $0x8] sm:$0xff]
  %v231 = vld [vmem:[%s6 + $0x10] sm:$0xff]
  %v232 = vld [vmem:[%s6 + $0x18] sm:$0xff]
  %v233 = vld [vmem:[%s6 + $0x20] sm:$0xf]
  %235 = vrot.lane.b32.xlu0 %v222, 127
  %v236 = vpop.permute.xlu0 %235
  %238 = vrot.lane.b32.xlu0 %v222, 126
  %v239 = vpop.permute.xlu0 %238
  %241 = vrot.lane.b32.xlu0 %v222, 125
  %v242 = vpop.permute.xlu0 %241
  %244 = vrot.lane.b32.xlu0 %v222, 124
  %v245 = vpop.permute.xlu0 %244
  %248 = vset.pattern.permute.xlu0 0
  %249 = vperm.xlu0 %248, %v227
  %v250 = vpop.permute.xlu0 %249
  %253 = vset.pattern.permute.xlu0 0
  %254 = vperm.xlu0 %253, %v228
  %v255 = vpop.permute.xlu0 %254
  %vm257 = vcmask 326656
  %v259 = vsel %vm257, %v225, 0
  %v262 = vsel %vm257, %v226, 0
  %264 = vmatprep.subr.mxu0 0.0
  %265 = vmatpush1.msra.mxu0 %v222
  %266 = vmatprep.subr.mxu0 0.0
  %267 = vmatpush1.msra.mxu0 %v236
  %268 = vmatprep.subr.mxu0 0.0
  %269 = vmatpush1.msra.mxu0 %v239
  %270 = vmatprep.subr.mxu0 0.0
  %271 = vmatpush1.msra.mxu0 %v242
  %272 = vmatprep.subr.mxu0 0.0
  %273 = vmatpush1.msra.mxu0 %v245
  %274 = vmatprep.subr.mxu0 0.0
  %275 = vmatpush1.msra.mxu0 0.0
  %276 = vmatprep.subr.mxu0 0.0
  %277 = vmatpush1.msra.mxu0 0.0
  %278 = vmatprep.subr.mxu0 0.0
  %279 = vmatpush1.msra.mxu0 0.0
  %280 = vmatprep.subr.mxu0 0.0
  %281 = vmatpush1.msra.mxu0 0.0
  %282 = vmatprep.subr.mxu0 0.0
  %283 = vmatpush1.msra.mxu0 0.0
  %284 = vmatprep.subr.mxu0 0.0
  %285 = vmatpush1.msra.mxu0 0.0
  %286 = vmatprep.subr.mxu0 0.0
  %287 = vmatpush1.msra.mxu0 0.0
  %288 = vmatprep.subr.mxu0 0.0
  %289 = vmatpush1.msra.mxu0 0.0
  %290 = vmatprep.subr.mxu0 0.0
  %291 = vmatpush1.msra.mxu0 0.0
  %292 = vmatprep.subr.mxu0 0.0
  %293 = vmatpush1.msra.mxu0 0.0
  %294 = vmatprep.subr.mxu0 0.0
  %295 = vmatpush1.msra.mxu0 0.0
  %296 = vmatprep.subr.mxu0 0.0
  %297 = vmatpush1.msra.mxu0 0.0
  %298 = vmatprep.subr.mxu0 0.0
  %299 = vmatpush1.msra.mxu0 0.0
  %300 = vmatprep.subr.mxu0 0.0
  %301 = vmatpush1.msra.mxu0 0.0
  %302 = vmatprep.subr.mxu0 0.0
  %303 = vmatpush1.msra.mxu0 0.0
  %304 = vmatprep.subr.mxu0 0.0
  %305 = vmatpush1.msra.mxu0 0.0
  %306 = vmatprep.subr.mxu0 0.0
  %307 = vmatpush1.msra.mxu0 0.0
  %308 = vmatprep.subr.mxu0 0.0
  %309 = vmatpush1.msra.mxu0 0.0
  %310 = vmatprep.subr.mxu0 0.0
  %311 = vmatpush1.msra.mxu0 0.0
  %312 = vmatprep.subr.mxu0 0.0
  %313 = vmatpush1.msra.mxu0 0.0
  %314 = vmatprep.subr.mxu0 0.0
  %315 = vmatpush1.msra.mxu0 0.0
  %316 = vmatprep.subr.mxu0 0.0
  %317 = vmatpush1.msra.mxu0 0.0
  %318 = vmatprep.subr.mxu0 0.0
  %319 = vmatpush1.msra.mxu0 0.0
  %320 = vmatprep.subr.mxu0 0.0
  %321 = vmatpush1.msra.mxu0 0.0
  %322 = vmatprep.subr.mxu0 0.0
  %323 = vmatpush1.msra.mxu0 0.0
  %324 = vmatprep.subr.mxu0 0.0
  %325 = vmatpush1.msra.mxu0 0.0
  %326 = vmatprep.subr.mxu0 0.0
  %327 = vmatpush1.msra.mxu0 0.0
  %328 = vmatprep.mubr.f32.mxu0 0.0
  %329 = vmatmul.mubr.f32.gmra.mrb[0].mxu0 %v259
  %v330 = vpop.f32.mrb[0].mxu0
  %v331 = vadd.f32 %v250, %v330
  %v332 = vpop.f32.mrb[0].mxu0
  %333 = vmatprep.mubr.f32.mxu0 0.0
  %334 = vmatmul.mubr.f32.gmra.mrb[0].mxu0 %v262
  %v335 = vpop.f32.mrb[0].mxu0
  %v336 = vadd.f32 %v255, %v335
  %v337 = vpop.f32.mrb[0].mxu0
  %338 = vdwg.mxu0
  %v339 = vmax.f32 %v331, 0.0
  %v340 = vmax.f32 %v336, 0.0
  %v342 = vsel %vm35, %v339, 0
  %v345 = vsel %vm35, %v340, 0
  %vm347 = vcmask 1043456
  %v349 = vsel %vm347, %v233, 0
  %351 = vmatprep.subr.mxu0 0.0
  %352 = vmatpush1.msra.mxu0 %v229
  %353 = vmatprep.subr.mxu0 0.0
  %354 = vmatpush1.msra.mxu0 %v230
  %355 = vmatprep.subr.mxu0 0.0
  %356 = vmatpush1.msra.mxu0 %v231
  %357 = vmatprep.subr.mxu0 0.0
  %358 = vmatpush1.msra.mxu0 %v232
  %359 = vmatprep.subr.mxu0 0.0
  %360 = vmatpush1.msra.mxu0 %v349
  %361 = vmatprep.subr.mxu0 0.0
  %362 = vmatpush1.msra.mxu0 0.0
  %363 = vmatprep.subr.mxu0 0.0
  %364 = vmatpush1.msra.mxu0 0.0
  %365 = vmatprep.subr.mxu0 0.0
  %366 = vmatpush1.msra.mxu0 0.0
  %367 = vmatprep.subr.mxu0 0.0
  %368 = vmatpush1.msra.mxu0 0.0
  %369 = vmatprep.subr.mxu0 0.0
  %370 = vmatpush1.msra.mxu0 0.0
  %371 = vmatprep.subr.mxu0 0.0
  %372 = vmatpush1.msra.mxu0 0.0
  %373 = vmatprep.subr.mxu0 0.0
  %374 = vmatpush1.msra.mxu0 0.0
  %375 = vmatprep.subr.mxu0 0.0
  %376 = vmatpush1.msra.mxu0 0.0
  %377 = vmatprep.subr.mxu0 0.0
  %378 = vmatpush1.msra.mxu0 0.0
  %379 = vmatprep.subr.mxu0 0.0
  %380 = vmatpush1.msra.mxu0 0.0
  %381 = vmatprep.subr.mxu0 0.0
  %382 = vmatpush1.msra.mxu0 0.0
  %383 = vmatprep.subr.mxu0 0.0
  %384 = vmatpush1.msra.mxu0 0.0
  %385 = vmatprep.subr.mxu0 0.0
  %386 = vmatpush1.msra.mxu0 0.0
  %387 = vmatprep.subr.mxu0 0.0
  %388 = vmatpush1.msra.mxu0 0.0
  %389 = vmatprep.subr.mxu0 0.0
  %390 = vmatpush1.msra.mxu0 0.0
  %391 = vmatprep.subr.mxu0 0.0
  %392 = vmatpush1.msra.mxu0 0.0
  %393 = vmatprep.subr.mxu0 0.0
  %394 = vmatpush1.msra.mxu0 0.0
  %395 = vmatprep.subr.mxu0 0.0
  %396 = vmatpush1.msra.mxu0 0.0
  %397 = vmatprep.subr.mxu0 0.0
  %398 = vmatpush1.msra.mxu0 0.0
  %399 = vmatprep.subr.mxu0 0.0
  %400 = vmatpush1.msra.mxu0 0.0
  %401 = vmatprep.subr.mxu0 0.0
  %402 = vmatpush1.msra.mxu0 0.0
  %403 = vmatprep.subr.mxu0 0.0
  %404 = vmatpush1.msra.mxu0 0.0
  %405 = vmatprep.subr.mxu0 0.0
  %406 = vmatpush1.msra.mxu0 0.0
  %407 = vmatprep.subr.mxu0 0.0
  %408 = vmatpush1.msra.mxu0 0.0
  %409 = vmatprep.subr.mxu0 0.0
  %410 = vmatpush1.msra.mxu0 0.0
  %411 = vmatprep.subr.mxu0 0.0
  %412 = vmatpush1.msra.mxu0 0.0
  %413 = vmatprep.subr.mxu0 0.0
  %414 = vmatpush1.msra.mxu0 0.0
  %415 = vmatprep.mubr.f32.mxu0 0.0
  %416 = vmatmul.mubr.f32.gmra.mrb[0].mxu0 %v342
  %v417 = vpop.f32.mrb[0].mxu0
  %v418 = vadd.f32 0.0, %v417
  %v419 = vpop.f32.mrb[0].mxu0
  %420 = vmatprep.mubr.f32.mxu0 0.0
  %421 = vmatmul.mubr.f32.gmra.mrb[0].mxu0 %v345
  %v422 = vpop.f32.mrb[0].mxu0
  %v423 = vadd.f32 0.0, %v422
  %v424 = vpop.f32.mrb[0].mxu0
  %425 = vdwg.mxu0
  %v426 = vld [vmem:[%s7] sm:$0xff]
  %v427 = vld [vmem:[%s8] sm:$0xff]
  %v428 = vld [vmem:[%s9] sm:$0xff]
  %v429 = vld [vmem:[%s9 + $0x8] sm:$0x3f]
  %432 = vrot.lane.b32.xlu0 %v418, 127
  %v433 = vpop.permute.xlu0 %432
  %434 = vrot.lane.b32.xlu0 %v423, 127
  %v435 = vpop.permute.xlu0 %434
  %438 = vrot.lane.b32.xlu0 %v418, 126
  %v439 = vpop.permute.xlu0 %438
  %440 = vrot.lane.b32.xlu0 %v423, 126
  %v441 = vpop.permute.xlu0 %440
  %445 = vset.pattern.permute.xlu0 0
  %446 = vperm.xlu0 %445, %v427
  %v447 = vpop.permute.xlu0 %446
  %vm449 = vcmask 392192
  %v451 = vsel %vm449, %v426, 0
  %453 = vmatprep.subr.mxu0 0.0
  %454 = vmatpush1.msra.mxu0 %v418
  %455 = vmatprep.subr.mxu0 0.0
  %456 = vmatpush1.msra.mxu0 %v423
  %457 = vmatprep.subr.mxu0 0.0
  %458 = vmatpush1.msra.mxu0 %v433
  %459 = vmatprep.subr.mxu0 0.0
  %460 = vmatpush1.msra.mxu0 %v435
  %461 = vmatprep.subr.mxu0 0.0
  %462 = vmatpush1.msra.mxu0 %v439
  %463 = vmatprep.subr.mxu0 0.0
  %464 = vmatpush1.msra.mxu0 %v441
  %465 = vmatprep.subr.mxu0 0.0
  %466 = vmatpush1.msra.mxu0 0.0
  %467 = vmatprep.subr.mxu0 0.0
  %468 = vmatpush1.msra.mxu0 0.0
  %469 = vmatprep.subr.mxu0 0.0
  %470 = vmatpush1.msra.mxu0 0.0
  %471 = vmatprep.subr.mxu0 0.0
  %472 = vmatpush1.msra.mxu0 0.0
  %473 = vmatprep.subr.mxu0 0.0
  %474 = vmatpush1.msra.mxu0 0.0
  %475 = vmatprep.subr.mxu0 0.0
  %476 = vmatpush1.msra.mxu0 0.0
  %477 = vmatprep.subr.mxu0 0.0
  %478 = vmatpush1.msra.mxu0 0.0
  %479 = vmatprep.subr.mxu0 0.0
  %480 = vmatpush1.msra.mxu0 0.0
  %481 = vmatprep.subr.mxu0 0.0
  %482 = vmatpush1.msra.mxu0 0.0
  %483 = vmatprep.subr.mxu0 0.0
  %484 = vmatpush1.msra.mxu0 0.0
  %485 = vmatprep.subr.mxu0 0.0
  %486 = vmatpush1.msra.mxu0 0.0
  %487 = vmatprep.subr.mxu0 0.0
  %488 = vmatpush1.msra.mxu0 0.0
  %489 = vmatprep.subr.mxu0 0.0
  %490 = vmatpush1.msra.mxu0 0.0
  %491 = vmatprep.subr.mxu0 0.0
  %492 = vmatpush1.msra.mxu0 0.0
  %493 = vmatprep.subr.mxu0 0.0
  %494 = vmatpush1.msra.mxu0 0.0
  %495 = vmatprep.subr.mxu0 0.0
  %496 = vmatpush1.msra.mxu0 0.0
  %497 = vmatprep.subr.mxu0 0.0
  %498 = vmatpush1.msra.mxu0 0.0
  %499 = vmatprep.subr.mxu0 0.0
  %500 = vmatpush1.msra.mxu0 0.0
  %501 = vmatprep.subr.mxu0 0.0
  %502 = vmatpush1.msra.mxu0 0.0
  %503 = vmatprep.subr.mxu0 0.0
  %504 = vmatpush1.msra.mxu0 0.0
  %505 = vmatprep.subr.mxu0 0.0
  %506 = vmatpush1.msra.mxu0 0.0
  %507 = vmatprep.subr.mxu0 0.0
  %508 = vmatpush1.msra.mxu0 0.0
  %509 = vmatprep.subr.mxu0 0.0
  %510 = vmatpush1.msra.mxu0 0.0
  %511 = vmatprep.subr.mxu0 0.0
  %512 = vmatpush1.msra.mxu0 0.0
  %513 = vmatprep.subr.mxu0 0.0
  %514 = vmatpush1.msra.mxu0 0.0
  %515 = vmatprep.subr.mxu0 0.0
  %516 = vmatpush1.msra.mxu0 0.0
  %517 = vmatprep.mubr.f32.mxu0 0.0
  %518 = vmatmul.mubr.f32.gmra.mrb[0].mxu0 %v451
  %v519 = vpop.f32.mrb[0].mxu0
  %v520 = vadd.f32 %v447, %v519
  %v521 = vpop.f32.mrb[0].mxu0
  %522 = vdwg.mxu0
  %v523 = vmax.f32 %v520, 0.0
  %vm524 = vcmask 113664
  %v526 = vsel %vm524, %v523, 0
  %vm528 = vcmask 1045504
  %v530 = vsel %vm528, %v429, 0
  %532 = vmatprep.subr.mxu0 0.0
  %533 = vmatpush1.msra.mxu0 %v428
  %534 = vmatprep.subr.mxu0 0.0
  %535 = vmatpush1.msra.mxu0 %v530
  %536 = vmatprep.subr.mxu0 0.0
  %537 = vmatpush1.msra.mxu0 0.0
  %538 = vmatprep.subr.mxu0 0.0
  %539 = vmatpush1.msra.mxu0 0.0
  %540 = vmatprep.subr.mxu0 0.0
  %541 = vmatpush1.msra.mxu0 0.0
  %542 = vmatprep.subr.mxu0 0.0
  %543 = vmatpush1.msra.mxu0 0.0
  %544 = vmatprep.subr.mxu0 0.0
  %545 = vmatpush1.msra.mxu0 0.0
  %546 = vmatprep.subr.mxu0 0.0
  %547 = vmatpush1.msra.mxu0 0.0
  %548 = vmatprep.subr.mxu0 0.0
  %549 = vmatpush1.msra.mxu0 0.0
  %550 = vmatprep.subr.mxu0 0.0
  %551 = vmatpush1.msra.mxu0 0.0
  %552 = vmatprep.subr.mxu0 0.0
  %553 = vmatpush1.msra.mxu0 0.0
  %554 = vmatprep.subr.mxu0 0.0
  %555 = vmatpush1.msra.mxu0 0.0
  %556 = vmatprep.subr.mxu0 0.0
  %557 = vmatpush1.msra.mxu0 0.0
  %558 = vmatprep.subr.mxu0 0.0
  %559 = vmatpush1.msra.mxu0 0.0
  %560 = vmatprep.subr.mxu0 0.0
  %561 = vmatpush1.msra.mxu0 0.0
  %562 = vmatprep.subr.mxu0 0.0
  %563 = vmatpush1.msra.mxu0 0.0
  %564 = vmatprep.subr.mxu0 0.0
  %565 = vmatpush1.msra.mxu0 0.0
  %566 = vmatprep.subr.mxu0 0.0
  %567 = vmatpush1.msra.mxu0 0.0
  %568 = vmatprep.subr.mxu0 0.0
  %569 = vmatpush1.msra.mxu0 0.0
  %570 = vmatprep.subr.mxu0 0.0
  %571 = vmatpush1.msra.mxu0 0.0
  %572 = vmatprep.subr.mxu0 0.0
  %573 = vmatpush1.msra.mxu0 0.0
  %574 = vmatprep.subr.mxu0 0.0
  %575 = vmatpush1.msra.mxu0 0.0
  %576 = vmatprep.subr.mxu0 0.0
  %577 = vmatpush1.msra.mxu0 0.0
  %578 = vmatprep.subr.mxu0 0.0
  %579 = vmatpush1.msra.mxu0 0.0
  %580 = vmatprep.subr.mxu0 0.0
  %581 = vmatpush1.msra.mxu0 0.0
  %582 = vmatprep.subr.mxu0 0.0
  %583 = vmatpush1.msra.mxu0 0.0
  %584 = vmatprep.subr.mxu0 0.0
  %585 = vmatpush1.msra.mxu0 0.0
  %586 = vmatprep.subr.mxu0 0.0
  %587 = vmatpush1.msra.mxu0 0.0
  %588 = vmatprep.subr.mxu0 0.0
  %589 = vmatpush1.msra.mxu0 0.0
  %590 = vmatprep.subr.mxu0 0.0
  %591 = vmatpush1.msra.mxu0 0.0
  %592 = vmatprep.subr.mxu0 0.0
  %593 = vmatpush1.msra.mxu0 0.0
  %594 = vmatprep.subr.mxu0 0.0
  %595 = vmatpush1.msra.mxu0 0.0
  %596 = vmatprep.mubr.f32.mxu0 0.0
  %597 = vmatmul.mubr.f32.gmra.mrb[0].mxu0 %v526
  %v598 = vpop.f32.mrb[0].mxu0
  %v599 = vadd.f32 0.0, %v598
  %v600 = vpop.f32.mrb[0].mxu0
  %601 = vdwg.mxu0
  %vm602 = vcmask 97280
  %603 = vst.msk [vmem:[%s10] sm:$0xff] %vm602, %v599
  // Predicated region
  $region42: #{conv1d_stack.1} parent=0 // pred_check
    _
  $region43: #{conv1d_stack.1} parent=0 // pred_check_branch
    %605 = sbr.rel (0) target = $region45
  $region44: #{conv1d_stack.1} parent=0 // pred_region
    _
  $region45: #{conv1d_stack.1} parent=0 // pred_fallthru
    _
  // Predicated region
  $region46: #{conv1d_stack.1} parent=0 // pred_check
    _
  $region47: #{conv1d_stack.1} parent=0 // pred_check_branch
    %607 = sbr.rel (0) target = $region49
  $region48: #{conv1d_stack.1} parent=0 // pred_region
    _
  $region49: #{conv1d_stack.1} parent=0 // pred_fallthru
    _

</llo_original>
